<compile_context>
chip_gen: v7x
topology: tpu7x:2x2x1
jax: 0.10.0
libtpu: 0.0.40
codegen_flags: <defaults>
</compile_context>

<pallas_src>
import functools
import math

import numpy as np
import jax
import jax.numpy as jnp
from jax import lax
from jax.experimental import pallas as pl
from jax.experimental.pallas import tpu as pltpu

_EPS = 1e-8
_CLIP_EPS = 1e-6                 # f32-representable clip margin
_LANE = 128
_VMEM = pltpu.MemorySpace.VMEM
_SMEM = pltpu.MemorySpace.SMEM


def _round_up(n, m):
    return ((n + m - 1) // m) * m


def _device_kind():
    try:
        return jax.devices()[0].device_kind.lower()
    except Exception:
        return ""


_KIND = _device_kind()
_IS_V5 = "v5" in _KIND
_IS_V6 = "v6" in _KIND
# bf16 EUP/VPU path exists on v6e/v7x; on v5e the casts would be pure overhead.
_BF16_ACT = ("v6" in _KIND) or ("v7" in _KIND)

if _IS_V5 or _IS_V6:
    _VMEM_LIMIT = 100 * 1024 * 1024          # 128 MiB physical VMEM on v5e/v6e
    _PREF_TM, _PREF_TN = (256, 512) if _IS_V5 else (512, 1024)
else:                                        # v7x (64 MiB/TC) or unknown: stay safe
    _VMEM_LIMIT = 48 * 1024 * 1024
    _PREF_TM, _PREF_TN = 256, 512


def _pad2d(a, rows, cols):
    return jnp.pad(a, ((0, rows - a.shape[0]), (0, cols - a.shape[1])))


def _visual_batch_tile(b, p, dp):
    """Images per grid step: TB*P rows >= 128 (v5e) / 256 (else), TB multiple of 8."""
    target_rows = 128 if _IS_V5 else 256
    tb = _round_up(max(1, -(-target_rows // p)), 8)
    cap = (4 * 1024 * 1024) // max(1, p * dp * 2)        # keep bf16 patch block ~<=4 MiB
    cap = max(8, (cap // 8) * 8)
    tb = min(tb, cap)
    tb = min(tb, _round_up(b, 8))
    return max(8, tb)


# ------------------------------------------------------------------ kernels


def _exp_map0(z, curv):
    # Lorentz exponential map at origin: sinh(sqrt(c)*||z||) * z / (sqrt(c)*||z||)
    rc_norm = jnp.sqrt(curv) * jnp.sqrt(jnp.sum(z * z, axis=-1, keepdims=True))
    s = jnp.maximum(rc_norm, _EPS)
    e = jnp.exp(s)                           # single EUP transcendental per row
    sinh_s = 0.5 * (e - 1.0 / e)
    return sinh_s * z / jnp.maximum(rc_norm, _EPS)


def _hyper_epilogue(z_base, scal_ref, feat_ref, side_ref):
    # alpha-scale + exp_map0 + per-row Lorentz side terms (time, euclidean norm).
    curv = scal_ref[1]
    z = _exp_map0(z_base * scal_ref[0], curv)
    feat_ref[...] = z
    sq = jnp.sum(z * z, axis=-1, keepdims=True)
    side_ref[:, 0:1] = jnp.sqrt(1.0 / curv + sq)          # x_time
    side_ref[:, 1:2] = jnp.sqrt(sq)                       # x_norm


def _visual_encode_kernel(patches_ref, pool_ref, w_ref, b_ref, wproj_ref, scal_ref,
                          feat_ref, side_ref, *, bf16_act):
    # TB images per grid step.
    #   patches: (TB*P, Dp) bf16 (raw pixels; normalization folded into w/b)
    #   pool:    (TB, TB*P) f32 block-diagonal mean-pooling matrix
    #   w: (Dp, Wp) bf16   b: (1, Wp) f32   wproj: (Wp, Ep) bf16
    #   scal: SMEM (2,) = [alpha_exp, curv]
    h = jnp.dot(patches_ref[...], w_ref[...],
                preferred_element_type=jnp.float32) + b_ref[...]       # (TB*P, Wp)
    if bf16_act:
        h = jnp.tanh(h.astype(jnp.bfloat16)).astype(jnp.float32)
    else:
        h = jnp.tanh(h)
    pooled = jnp.dot(pool_ref[...], h, preferred_element_type=jnp.float32)  # (TB, Wp)
    z = jnp.dot(pooled.astype(jnp.bfloat16), wproj_ref[...],
                preferred_element_type=jnp.float32)                     # (TB, Ep)
    _hyper_epilogue(z, scal_ref, feat_ref, side_ref)


def _text_encode_kernel(emb_ref, wtok_ref, wproj_ref, scal_ref,
                        feat_ref, side_ref, *, bf16_act):
    # Only the EOT-token embeddings are encoded (tile of batch rows per step).
    # TODO(synk): valid only for the single-linear text-encoder stand-in; a real
    # TransformerTextEncoder mixes tokens and must run over the full sequence.
    h = jnp.dot(emb_ref[...], wtok_ref[...], preferred_element_type=jnp.float32)
    if bf16_act:
        h = jnp.tanh(h.astype(jnp.bfloat16))
    else:
        h = jnp.tanh(h)
    z = jnp.dot(h.astype(jnp.bfloat16), wproj_ref[...],
                preferred_element_type=jnp.float32)
    _hyper_epilogue(z, scal_ref, feat_ref, side_ref)


def _pairwise_oxy_cos_kernel(img_ref, iside_ref, txt_t_ref, tside_t_ref, curv_ref,
                             icos_ref, tcos_ref):
    # Fused exterior-angle cosines for both directions from ONE (tm, tn) matmul.
    #   img:     (tm, Ep) f32      iside:   (tm, 2)  f32 = [x_time, x_norm]
    #   txt_t:   (Ep, tn) f32      tside_t: (2,  tn) f32 = [y_time; y_norm]
    curv = curv_ref[0]
    x_time = iside_ref[:, 0:1]                                      # (tm, 1)
    x_norm = iside_ref[:, 1:2]
    y_time_t = tside_t_ref[0:1, :]                                  # (1, tn)
    y_norm_t = tside_t_ref[1:2, :]
    xy = jnp.dot(img_ref[...], txt_t_ref[...],
                 preferred_element_type=jnp.float32)                # (tm, tn) f32 matmul
    c_xyl = curv * (xy - x_time * y_time_t)                         # curv * Lorentz inner
    inv_root = lax.rsqrt(jnp.maximum(c_xyl * c_xyl - 1.0, 1e-12))
    inv_xn = pl.reciprocal(x_norm + _EPS, approx=True)              # (tm, 1)
    inv_yn_t = pl.reciprocal(y_norm_t + _EPS, approx=True)          # (1, tn)
    # cos(oxy_angle(image_i, text_j))
    icos = (y_time_t + c_xyl * x_time) * (inv_root * inv_xn)
    icos_ref[...] = jnp.clip(icos, -1.0 + _CLIP_EPS, 1.0 - _CLIP_EPS)
    # cos(oxy_angle(text_j, image_i)) stored at [i, j]; consumed over axis 0 outside
    tcos = (x_time + c_xyl * y_time_t) * (inv_root * inv_yn_t)
    tcos_ref[...] = jnp.clip(tcos, -1.0 + _CLIP_EPS, 1.0 - _CLIP_EPS)


# ------------------------------------------------------------------ wrappers


def visual_encode(patches_flat, pool, w_eff, bias, w_proj, scalars, *, tb, p):
    n_rows, dp = patches_flat.shape
    b_pad = n_rows // p
    wp = w_eff.shape[1]
    ep = w_proj.shape[1]
    kernel = functools.partial(_visual_encode_kernel, bf16_act=_BF16_ACT)
    return pl.pallas_call(
        kernel,
        grid=(b_pad // tb,),
        out_shape=(jax.ShapeDtypeStruct((b_pad, ep), jnp.float32),
                   jax.ShapeDtypeStruct((b_pad, 2), jnp.float32)),
        in_specs=[
            pl.BlockSpec((tb * p, dp), lambda i: (i, 0), memory_space=_VMEM),
            pl.BlockSpec((tb, tb * p), lambda i: (0, 0), memory_space=_VMEM),
            pl.BlockSpec((dp, wp), lambda i: (0, 0), memory_space=_VMEM),
            pl.BlockSpec((1, wp), lambda i: (0, 0), memory_space=_VMEM),
            pl.BlockSpec((wp, ep), lambda i: (0, 0), memory_space=_VMEM),
            pl.BlockSpec(memory_space=_SMEM),
        ],
        out_specs=(pl.BlockSpec((tb, ep), lambda i: (i, 0), memory_space=_VMEM),
                   pl.BlockSpec((tb, 2), lambda i: (i, 0), memory_space=_VMEM)),
        compiler_params=pltpu.CompilerParams(
            dimension_semantics=("parallel",),
            vmem_limit_bytes=_VMEM_LIMIT),
    )(patches_flat, pool, w_eff, bias, w_proj, scalars)


def text_encode(emb_eot, w_tok, w_proj, scalars, *, tbt):
    b_pad, e = emb_eot.shape
    wt = w_tok.shape[1]
    ep = w_proj.shape[1]
    kernel = functools.partial(_text_encode_kernel, bf16_act=_BF16_ACT)
    return pl.pallas_call(
        kernel,
        grid=(b_pad // tbt,),
        out_shape=(jax.ShapeDtypeStruct((b_pad, ep), jnp.float32),
                   jax.ShapeDtypeStruct((b_pad, 2), jnp.float32)),
        in_specs=[
            pl.BlockSpec((tbt, e), lambda i: (i, 0), memory_space=_VMEM),
            pl.BlockSpec((e, wt), lambda i: (0, 0), memory_space=_VMEM),
            pl.BlockSpec((wt, ep), lambda i: (0, 0), memory_space=_VMEM),
            pl.BlockSpec(memory_space=_SMEM),
        ],
        out_specs=(pl.BlockSpec((tbt, ep), lambda i: (i, 0), memory_space=_VMEM),
                   pl.BlockSpec((tbt, 2), lambda i: (i, 0), memory_space=_VMEM)),
        compiler_params=pltpu.CompilerParams(
            dimension_semantics=("parallel",),
            vmem_limit_bytes=_VMEM_LIMIT),
    )(emb_eot, w_tok, w_proj, scalars)


def pairwise_oxy_cos(img_feats, img_side, txt_feats, txt_side, curv_arr):
    n, ep = img_feats.shape
    m = txt_feats.shape[0]
    # lane-dense, sublane-aligned tiles; pad rows/cols (zero pads stay finite
    # through the cosine math and are sliced off afterwards)
    tm = min(_PREF_TM, _round_up(max(n, 8), 8))
    tn = min(_PREF_TN, _round_up(max(m, _LANE), _LANE))
    n_pad = _round_up(n, tm)
    m_pad = _round_up(m, tn)
    img_f = jnp.pad(img_feats, ((0, n_pad - n), (0, 0)))
    img_s = jnp.pad(img_side, ((0, n_pad - n), (0, 0)))
    txt_t = jnp.pad(txt_feats.T, ((0, 0), (0, m_pad - m)))       # (Ep, m_pad)
    txt_s_t = jnp.pad(txt_side.T, ((0, 0), (0, m_pad - m)))      # (2,  m_pad)
    icos, tcos = pl.pallas_call(
        _pairwise_oxy_cos_kernel,
        grid=(n_pad // tm, m_pad // tn),
        out_shape=(jax.ShapeDtypeStruct((n_pad, m_pad), jnp.float32),
                   jax.ShapeDtypeStruct((n_pad, m_pad), jnp.float32)),
        in_specs=[
            pl.BlockSpec((tm, ep), lambda i, j: (i, 0), memory_space=_VMEM),
            pl.BlockSpec((tm, 2), lambda i, j: (i, 0), memory_space=_VMEM),
            pl.BlockSpec((ep, tn), lambda i, j: (0, j), memory_space=_VMEM),
            pl.BlockSpec((2, tn), lambda i, j: (0, j), memory_space=_VMEM),
            pl.BlockSpec(memory_space=_SMEM),
        ],
        out_specs=(pl.BlockSpec((tm, tn), lambda i, j: (i, j), memory_space=_VMEM),
                   pl.BlockSpec((tm, tn), lambda i, j: (i, j), memory_space=_VMEM)),
        compiler_params=pltpu.CompilerParams(
            dimension_semantics=("parallel", "parallel"),
            vmem_limit_bytes=_VMEM_LIMIT),
    )(img_f, img_s, txt_t, txt_s_t, curv_arr)
    return icos[:n, :m], tcos[:n, :m]


# ------------------------------------------------------------------ glue / forward


def _extract_patches(images, ph, pw):
    b, c, h, w = images.shape
    x = images.reshape(b, c, h // ph, ph, w // pw, pw)
    x = x.transpose(0, 2, 4, 1, 3, 5)                 # (B, Hp, Wp, C, ph, pw)
    return x.reshape(b, (h // ph) * (w // pw), c * ph * pw)


def _pad_tokens(tokens_list, context_length):
    proc = []
    for t in tokens_list:
        t = np.asarray(t, dtype=np.int32)
        if len(t) > context_length:                   # truncate, keep EOT token
            eot = t[-1]
            t = t[:context_length].copy()
            t[-1] = eot
        proc.append(t)
    max_len = max(len(t) for t in proc)
    out = np.zeros((len(proc), max_len), dtype=np.int32)
    for i, t in enumerate(proc):
        out[i, : len(t)] = t
    return jnp.asarray(out)


def atmg_forward(params, images, tokens_list, *, patch=8, context_length=8,
                 curv_init=1.0,
                 pixel_mean=(0.485, 0.456, 0.406), pixel_std=(0.229, 0.224, 0.225)):
    b, c, h, w = images.shape
    ph = pw = patch
    d_patch = c * ph * pw
    p = (h // ph) * (w // pw)

    # ---- parameter clamps (as in ATMG.forward), computed once in XLA ----
    curv = jnp.exp(jnp.clip(params["curv"], math.log(curv_init / 5),
                            math.log(curv_init * 5))).astype(jnp.float32)
    v_alpha_exp = jnp.exp(jnp.minimum(params["visual_alpha"], 0.0)).astype(jnp.float32)
    t_alpha_exp = jnp.exp(jnp.minimum(params["textual_alpha"], 0.0)).astype(jnp.float32)
    scale = jnp.exp(jnp.minimum(params["logit_scale"], 4.6052)).astype(jnp.float32)

    v_scal = jnp.stack([v_alpha_exp, curv])
    t_scal = jnp.stack([t_alpha_exp, curv])
    curv_arr = curv.reshape(1)

    # ---- pad feature dims to lane-dense multiples of 128 (zero padding keeps
    #      norms / Lorentz inner products identical) ----
    v_width = params["w_patch"].shape[1]
    t_width = params["w_tok"].shape[1]
    embed_dim = params["visual_proj_t"].shape[1]
    wp = _round_up(v_width, _LANE)
    wt = _round_up(t_width, _LANE)
    ep = _round_up(embed_dim, _LANE)

    # fold pixel normalization into the patch-embed weight + bias
    mean_vec = jnp.repeat(jnp.asarray(pixel_mean, jnp.float32), ph * pw)
    istd_vec = 1.0 / jnp.repeat(jnp.asarray(pixel_std, jnp.float32), ph * pw)
    w_eff = _pad2d(istd_vec[:, None] * params["w_patch"], d_patch, wp).astype(jnp.bfloat16)
    bias = _pad2d((-(mean_vec * istd_vec) @ params["w_patch"])[None, :], 1, wp)
    w_vproj = _pad2d(params["visual_proj_t"], wp, ep).astype(jnp.bfloat16)
    w_tok = _pad2d(params["w_tok"], params["w_tok"].shape[0], wt).astype(jnp.bfloat16)
    w_tproj = _pad2d(params["textual_proj_t"], wt, ep).astype(jnp.bfloat16)

    # ---- image branch: patchify (glue) + fused embed/pool/proj/expmap kernel ----
    tb = _visual_batch_tile(b, p, d_patch)
    b_pad_v = _round_up(b, tb)
    patches = _extract_patches(images, ph, pw)                         # (B, P, Dp) f32
    # TODO(synk): consider allow_input_fusion so the patchify transpose + bf16 cast
    # fuses into the Pallas input DMA instead of a separate HBM round trip.
    patches = jnp.pad(patches, ((0, b_pad_v - b), (0, 0), (0, 0)))
    patches_flat = patches.reshape(b_pad_v * p, d_patch).astype(jnp.bfloat16)
    pool_mat = jnp.repeat(jnp.eye(tb, dtype=jnp.float32), p, axis=1) / float(p)
    img_feats, img_side = visual_encode(patches_flat, pool_mat, w_eff, bias,
                                        w_vproj, v_scal, tb=tb, p=p)
    img_feats, img_side = img_feats[:b], img_side[:b]

    # ---- text branch: pad tokens, pick the EOT token, fused encode/proj/expmap ----
    tokens = _pad_tokens(tokens_list, context_length)                  # (B, L)
    eos_idx = jnp.argmax(tokens, axis=-1)                              # CLIP-style EOT pick
    # TODO(synk): assumes the EOT id is the largest token id (true for CLIP vocab).
    eot_tok = tokens[jnp.arange(tokens.shape[0]), eos_idx]
    emb_eot = params["token_emb"][eot_tok].astype(jnp.bfloat16)        # (B, E)
    tbt = min(256, _round_up(max(b, 8), 8))
    b_pad_t = _round_up(b, tbt)
    emb_eot = jnp.pad(emb_eot, ((0, b_pad_t - b), (0, 0)))
    txt_feats, txt_side = text_encode(emb_eot, w_tok, w_tproj, t_scal, tbt=tbt)
    txt_feats, txt_side = txt_feats[:b], txt_side[:b]

    # ---- contrastive loss (single process: gather_across_processes == identity) ----
    icos, tcos = pairwise_oxy_cos(img_feats, img_side, txt_feats, txt_side, curv_arr)
    # TODO(synk): acos has no guaranteed Mosaic lowering; the tiny (B, B) arccos +
    # cross-entropy epilogue runs in plain XLA (sign convention follows the reference:
    # image_logits = +angle, text_logits = -angle; text direction consumed over
    # axis 0 so no (B, B) transpose is materialized).
    img_logits = scale * jnp.arccos(icos)            # [image_i, text_j]
    txt_frame = -scale * jnp.arccos(tcos)            # [image_i, text_j] == text_logits[j, i]
    ce_img = jnp.mean(jax.nn.logsumexp(img_logits, axis=-1) - jnp.diagonal(img_logits))
    ce_txt = jnp.mean(jax.nn.logsumexp(txt_frame, axis=0) - jnp.diagonal(txt_frame))
    loss = 0.5 * (ce_img + ce_txt)
    return {
        "loss": loss,
        "logging": {"contrastive_loss": loss, "logit_scale": scale, "curv": curv},
    }


# ------------------------------------------------------------------ main


if __name__ == "__main__":
    key = jax.random.PRNGKey(0)
    B, C, H, W = 2, 3, 16, 16
    PATCH = 8
    D_PATCH = C * PATCH * PATCH
    VISUAL_WIDTH = 32
    TEXTUAL_WIDTH = 32
    EMB_DIM = 32
    VOCAB = 64
    EMBED_DIM = 16
    CONTEXT_LEN = 8

    keys = jax.random.split(key, 8)
    images = jax.random.uniform(keys[0], (B, C, H, W), jnp.float32)   # pixels in [0, 1]
    # variable-length token sequences; last token is the EOT (largest id), as in CLIP
    tokens_list = [
        np.array([5, 12, 7, 63], dtype=np.int32),
        np.array([9, 3, 44, 21, 17, 2, 63], dtype=np.int32),
    ]

    params = {
        # visual encoder stand-in (patch embed)
        "w_patch": jax.random.normal(keys[1], (D_PATCH, VISUAL_WIDTH), jnp.float32) * D_PATCH ** -0.5,
        # textual encoder stand-in (token embedding + linear)
        "token_emb": jax.random.normal(keys[2], (VOCAB, EMB_DIM), jnp.float32) * 0.02,
        "w_tok": jax.random.normal(keys[3], (EMB_DIM, TEXTUAL_WIDTH), jnp.float32) * EMB_DIM ** -0.5,
        # ATMG parameters (shapes from __init__), stored transposed for x @ W
        "visual_proj_t": jax.random.normal(keys[4], (VISUAL_WIDTH, EMBED_DIM), jnp.float32) * VISUAL_WIDTH ** -0.5,
        "textual_proj_t": jax.random.normal(keys[5], (TEXTUAL_WIDTH, EMBED_DIM), jnp.float32) * TEXTUAL_WIDTH ** -0.5,
        "logit_scale": jnp.float32(math.log(1.0 / 0.07)),
        "curv": jnp.float32(math.log(1.0)),
        "visual_alpha": jnp.float32(math.log(EMBED_DIM ** -0.5)),
        "textual_alpha": jnp.float32(math.log(EMBED_DIM ** -0.5)),
    }

    out = atmg_forward(params, images, tokens_list, patch=PATCH, context_length=CONTEXT_LEN)
    jax.block_until_ready(out["loss"])
    assert out["loss"].shape == () and jnp.isfinite(out["loss"])
    print("KERNEL_OK")
</pallas_src>

<mosaic_0001>
module attributes {stable_mosaic.version = 11 : i64} {
  func.func @_visual_encode_kernel(%arg0: i32, %arg1: memref<32x192xbf16, #tpu.memory_space<vmem>>, %arg2: memref<8x32xf32, #tpu.memory_space<vmem>>, %arg3: memref<192x128xbf16, #tpu.memory_space<vmem>>, %arg4: memref<1x128xf32, #tpu.memory_space<vmem>>, %arg5: memref<128x128xbf16, #tpu.memory_space<vmem>>, %arg6: memref<2xf32, #tpu.memory_space<smem>>, %arg7: memref<8x128xf32, #tpu.memory_space<vmem>>, %arg8: memref<8x2xf32, #tpu.memory_space<vmem>>) attributes {dimension_semantics = [#tpu.dimension_semantics<parallel>], iteration_bounds = array<i64: 1>, scalar_prefetch = 0 : i64, scratch_operands = 0 : i64, tpu.core_type = #tpu.core_type<tc>, window_params = [{transform_indices = @transform_0, window_bounds = array<i64: 32, 192>}, {pipeline_mode = #tpu.pipeline_mode<synchronous>, transform_indices = @transform_1, window_bounds = array<i64: 8, 32>}, {pipeline_mode = #tpu.pipeline_mode<synchronous>, transform_indices = @transform_2, window_bounds = array<i64: 192, 128>}, {pipeline_mode = #tpu.pipeline_mode<synchronous>, transform_indices = @transform_3, window_bounds = array<i64: 1, 128>}, {pipeline_mode = #tpu.pipeline_mode<synchronous>, transform_indices = @transform_4, window_bounds = array<i64: 128, 128>}, {transform_indices = @transform_5, window_bounds = array<i64: 2>}, {transform_indices = @transform_6, window_bounds = array<i64: 8, 128>}, {transform_indices = @transform_7, window_bounds = array<i64: 8, 2>}]} {
    %c0 = arith.constant 0 : index
    %c0_0 = arith.constant 0 : index
    %0 = vector.load %arg1[%c0, %c0_0] : memref<32x192xbf16, #tpu.memory_space<vmem>>, vector<32x192xbf16>
    %c0_1 = arith.constant 0 : index
    %c0_2 = arith.constant 0 : index
    %1 = vector.load %arg3[%c0_1, %c0_2] : memref<192x128xbf16, #tpu.memory_space<vmem>>, vector<192x128xbf16>
    %cst = arith.constant dense<0.000000e+00> : vector<32x128xf32>
    %2 = tpu.matmul %0, %1, %cst {dimension_numbers = #tpu.dot_dimension_numbers<[1], [0], [0], [1], [0, 0, 1, 1], [], []>} : vector<32x192xbf16>, vector<192x128xbf16>, vector<32x128xf32> -> vector<32x128xf32>
    %c0_3 = arith.constant 0 : index
    %c0_4 = arith.constant 0 : index
    %3 = vector.load %arg4[%c0_3, %c0_4] : memref<1x128xf32, #tpu.memory_space<vmem>>, vector<1x128xf32>
    %4 = vector.broadcast %3 : vector<1x128xf32> to vector<32x128xf32>
    %5 = arith.addf %2, %4 : vector<32x128xf32>
    %6 = math.tanh %5 : vector<32x128xf32>
    %c0_5 = arith.constant 0 : index
    %c0_6 = arith.constant 0 : index
    %7 = vector.load %arg2[%c0_5, %c0_6] : memref<8x32xf32, #tpu.memory_space<vmem>>, vector<8x32xf32>
    %cst_7 = arith.constant dense<0.000000e+00> : vector<8x128xf32>
    %8 = tpu.matmul %7, %6, %cst_7 {dimension_numbers = #tpu.dot_dimension_numbers<[1], [0], [0], [1], [0, 0, 1, 1], [], []>} : vector<8x32xf32>, vector<32x128xf32>, vector<8x128xf32> -> vector<8x128xf32>
    %9 = arith.truncf %8 : vector<8x128xf32> to vector<8x128xbf16>
    %c0_8 = arith.constant 0 : index
    %c0_9 = arith.constant 0 : index
    %10 = vector.load %arg5[%c0_8, %c0_9] : memref<128x128xbf16, #tpu.memory_space<vmem>>, vector<128x128xbf16>
    %cst_10 = arith.constant dense<0.000000e+00> : vector<8x128xf32>
    %11 = tpu.matmul %9, %10, %cst_10 {dimension_numbers = #tpu.dot_dimension_numbers<[1], [0], [0], [1], [0, 0, 1, 1], [], []>} : vector<8x128xbf16>, vector<128x128xbf16>, vector<8x128xf32> -> vector<8x128xf32>
    %c1 = arith.constant 1 : index
    %12 = memref.load %arg6[%c1] : memref<2xf32, #tpu.memory_space<smem>>
    %c0_11 = arith.constant 0 : index
    %13 = memref.load %arg6[%c0_11] : memref<2xf32, #tpu.memory_space<smem>>
    %14 = vector.broadcast %13 : f32 to vector<8x128xf32>
    %15 = arith.mulf %11, %14 : vector<8x128xf32>
    %16 = math.sqrt %12 : f32
    %17 = arith.mulf %15, %15 : vector<8x128xf32>
    %cst_12 = arith.constant dense<0.000000e+00> : vector<8xf32>
    %18 = vector.multi_reduction <add>, %17, %cst_12 [1] : vector<8x128xf32> to vector<8xf32>
    %19 = vector.shape_cast %18 : vector<8xf32> to vector<8x1xf32>
    %20 = math.sqrt %19 : vector<8x1xf32>
    %21 = vector.broadcast %16 : f32 to vector<8x1xf32>
    %22 = arith.mulf %21, %20 : vector<8x1xf32>
    %cst_13 = arith.constant 9.99999993E-9 : f32
    %23 = vector.broadcast %cst_13 : f32 to vector<8x1xf32>
    %24 = arith.maximumf %22, %23 : vector<8x1xf32>
    %25 = math.exp %24 : vector<8x1xf32>
    %cst_14 = arith.constant 1.000000e+00 : f32
    %26 = vector.broadcast %cst_14 : f32 to vector<8x1xf32>
    %27 = arith.divf %26, %25 : vector<8x1xf32>
    %28 = arith.subf %25, %27 : vector<8x1xf32>
    %cst_15 = arith.constant 5.000000e-01 : f32
    %29 = vector.broadcast %cst_15 : f32 to vector<8x1xf32>
    %30 = arith.mulf %29, %28 : vector<8x1xf32>
    %31 = vector.broadcast %30 : vector<8x1xf32> to vector<8x128xf32>
    %32 = arith.mulf %31, %15 : vector<8x128xf32>
    %cst_16 = arith.constant 9.99999993E-9 : f32
    %33 = vector.broadcast %cst_16 : f32 to vector<8x1xf32>
    %34 = arith.maximumf %22, %33 : vector<8x1xf32>
    %35 = vector.broadcast %34 : vector<8x1xf32> to vector<8x128xf32>
    %36 = arith.divf %32, %35 : vector<8x128xf32>
    %c0_17 = arith.constant 0 : index
    %c0_18 = arith.constant 0 : index
    %37 = vector.load %arg7[%c0_17, %c0_18] : memref<8x128xf32, #tpu.memory_space<vmem>>, vector<8x128xf32>
    tpu.vector_store %arg7[%c0_17, %c0_18], %36 {strides = array<i32>} : memref<8x128xf32, #tpu.memory_space<vmem>>, vector<8x128xf32>,
    %38 = arith.mulf %36, %36 : vector<8x128xf32>
    %cst_19 = arith.constant dense<0.000000e+00> : vector<8xf32>
    %39 = vector.multi_reduction <add>, %38, %cst_19 [1] : vector<8x128xf32> to vector<8xf32>
    %40 = vector.shape_cast %39 : vector<8xf32> to vector<8x1xf32>
    %cst_20 = arith.constant 1.000000e+00 : f32
    %41 = arith.divf %cst_20, %12 : f32
    %42 = vector.broadcast %41 : f32 to vector<8x1xf32>
    %43 = arith.addf %42, %40 : vector<8x1xf32>
    %44 = math.sqrt %43 : vector<8x1xf32>
    %c0_21 = arith.constant 0 : index
    %c0_22 = arith.constant 0 : index
    %45 = vector.load %arg8[%c0_21, %c0_22] : memref<8x2xf32, #tpu.memory_space<vmem>>, vector<8x1xf32>
    tpu.vector_store %arg8[%c0_21, %c0_22], %44 {strides = array<i32>} : memref<8x2xf32, #tpu.memory_space<vmem>>, vector<8x1xf32>,
    %46 = math.sqrt %40 : vector<8x1xf32>
    %c0_23 = arith.constant 0 : index
    %c1_24 = arith.constant 1 : index
    %47 = vector.load %arg8[%c0_23, %c1_24] : memref<8x2xf32, #tpu.memory_space<vmem>>, vector<8x1xf32>
    tpu.vector_store %arg8[%c0_23, %c1_24], %46 {strides = array<i32>} : memref<8x2xf32, #tpu.memory_space<vmem>>, vector<8x1xf32>,
    return
  }
  func.func @transform_0(%arg0: i32) -> (i32, i32) {
    %c0_i32 = arith.constant 0 : i32
    %c0_i32_0 = arith.constant 0 : i32
    return %arg0, %c0_i32 : i32, i32
  }
  func.func @transform_1(%arg0: i32) -> (i32, i32) {
    %c0_i32 = arith.constant 0 : i32
    %c0_i32_0 = arith.constant 0 : i32
    %c0_i32_1 = arith.constant 0 : i32
    return %c0_i32, %c0_i32_0 : i32, i32
  }
  func.func @transform_2(%arg0: i32) -> (i32, i32) {
    %c0_i32 = arith.constant 0 : i32
    %c0_i32_0 = arith.constant 0 : i32
    %c0_i32_1 = arith.constant 0 : i32
    return %c0_i32, %c0_i32_0 : i32, i32
  }
  func.func @transform_3(%arg0: i32) -> (i32, i32) {
    %c0_i32 = arith.constant 0 : i32
    %c0_i32_0 = arith.constant 0 : i32
    %c0_i32_1 = arith.constant 0 : i32
    return %c0_i32, %c0_i32_0 : i32, i32
  }
  func.func @transform_4(%arg0: i32) -> (i32, i32) {
    %c0_i32 = arith.constant 0 : i32
    %c0_i32_0 = arith.constant 0 : i32
    %c0_i32_1 = arith.constant 0 : i32
    return %c0_i32, %c0_i32_0 : i32, i32
  }
  func.func @transform_5(%arg0: i32) -> i32 {
    %c0_i32 = arith.constant 0 : i32
    %c0_i32_0 = arith.constant 0 : i32
    return %c0_i32 : i32
  }
  func.func @transform_6(%arg0: i32) -> (i32, i32) {
    %c0_i32 = arith.constant 0 : i32
    %c0_i32_0 = arith.constant 0 : i32
    return %arg0, %c0_i32 : i32, i32
  }
  func.func @transform_7(%arg0: i32) -> (i32, i32) {
    %c0_i32 = arith.constant 0 : i32
    %c0_i32_0 = arith.constant 0 : i32
    return %arg0, %c0_i32 : i32, i32
  }
}

</mosaic_0001>

<llo_original>
// kernel: tpu_custom_call.1
$region0: #{tpu_custom_call.1}
  #allocation0 [shape = 'u32[]', space=smem, size = 0x4, offset = 0x4, fixed_abs, tag = 'smem constant byte address 0x4 - core index']
  #allocation1 [shape = 'u32[144,128]{1,0:T(1,128)}', space=vmem, size = 0x12000, scoped, tag = 'internal scratch']
  %s0 = inlined_call_operand.hbm [shape: bf16[32,192], index: 0, kind: input, shape index: {}]
  %s1 = inlined_call_operand.hbm [shape: f32[8,32], index: 1, kind: input, shape index: {}]
  %s2 = inlined_call_operand.hbm [shape: bf16[192,128], index: 2, kind: input, shape index: {}]
  %s3 = inlined_call_operand.vmem [shape: f32[1,128], index: 3, kind: input, shape index: {}]
  %s4 = inlined_call_operand.hbm [shape: bf16[128,128], index: 4, kind: input, shape index: {}]
  %s5 = inlined_call_operand.vmem [shape: f32[2], index: 5, kind: input, shape index: {}]
  %s6 = inlined_call_operand.hbm [shape: f32[8,128], index: 6, kind: output, shape index: {0}]
  %s7 = inlined_call_operand.vmem [shape: f32[8,2], index: 7, kind: output, shape index: {1}]
  %8 = xla_tuple %s6, %s7
  %s9 = sld [smem:[#allocation0]]
  $region62: #{tpu_custom_call.1} parent=0
    _
  %s11 = ssub.s32 1, %s9
  %s12 = scalar_select 0, %s11, %s9
  $region1: #{tpu_custom_call.1} parent=0
    #allocation2 [shape = 'u8[16384]{0}', space=vmem, size = 0x4000, scoped, tag = 'input window, operand 0, single buffered']
    #allocation3 [shape = 's32[1]{0}', space=sflag, size = 0x4, scoped, tag = 'scoped memory for tpu_custom_call.1']
    #allocation4 [shape = 's32[1]{0}', space=sflag, size = 0x4, scoped, tag = 'scoped memory for tpu_custom_call.1']
    #allocation5 [shape = 's32[1]{0}', space=sflag, size = 0x4, scoped, tag = 'scoped memory for tpu_custom_call.1']
    #allocation6 [shape = 'u8[4096]{0}', space=vmem, size = 0x1000, scoped, tag = 'input window, operand 1, single buffered']
    #allocation7 [shape = 's32[1]{0}', space=sflag, size = 0x4, scoped, tag = 'scoped memory for tpu_custom_call.1']
    #allocation8 [shape = 'u8[49152]{0}', space=vmem, size = 0xc000, scoped, tag = 'input window, operand 2, single buffered']
    #allocation9 [shape = 'u8[32768]{0}', space=vmem, size = 0x8000, scoped, tag = 'input window, operand 4, single buffered']
    #allocation10 [shape = 's32[1]{0}', space=sflag, size = 0x4, scoped, tag = 'scoped memory for tpu_custom_call.1']
    #allocation11 [shape = 'u8[512]{0}', space=smem, size = 0x200, scoped, tag = 'input window, operand 5, single buffered']
    #allocation12 [shape = 'u8[4096]{0}', space=vmem, size = 0x1000, scoped, tag = 'output window, operand 0, single buffered']
    %13 = vsyncpa [#allocation3], 0
    %14 = vsyncpa [#allocation7], 0
    %15 = vsyncpa [#allocation10], 0
    %16 = vsyncpa [#allocation5], 0
    %17 = vsyncpa [#allocation4], 0
    // Predicated region
    $region2: #{tpu_custom_call.1} parent=1 // pred_check
      _
    $region3: #{tpu_custom_call.1} parent=1 // pred_check_branch
      %19 = sbr.rel (0) target = $region5
    $region4: #{tpu_custom_call.1} parent=1 // pred_region
      %s21 = ssub.s32 512, 512
      %22 = vsyncadd [#allocation3], %s21
      %s23 = sshll.u32 [#allocation2], 4
      %s24 = int_to_ptr.vmem [resolvable:$true] %s23
      %29 = dma.hbm_to_vmem [thread:$0]  %s0, 512, %s24, [#allocation3], 128, 128, 8
    $region5: #{tpu_custom_call.1} parent=1 // pred_fallthru
      _
    // Predicated region
    $region6: #{tpu_custom_call.1} parent=1 // pred_check
      _
    $region7: #{tpu_custom_call.1} parent=1 // pred_check_branch
      %31 = sbr.rel (0) target = $region9
    $region8: #{tpu_custom_call.1} parent=1 // pred_region
      %s33 = ssub.s32 128, 128
      %34 = vsyncadd [#allocation7], %s33
      %s36 = sshll.u32 [#allocation6], 4
      %s37 = int_to_ptr.vmem [resolvable:$true] %s36
      %39 = dma.hbm_to_vmem [thread:$0]  %s1, 128, %s37, [#allocation7]
    $region9: #{tpu_custom_call.1} parent=1 // pred_fallthru
      _
    // Predicated region
    $region10: #{tpu_custom_call.1} parent=1 // pred_check
      _
    $region11: #{tpu_custom_call.1} parent=1 // pred_check_branch
      %41 = sbr.rel (0) target = $region13
    $region12: #{tpu_custom_call.1} parent=1 // pred_region
      %s43 = ssub.s32 1536, 1536
      %44 = vsyncadd [#allocation7], %s43
      %s45 = sshll.u32 [#allocation8], 4
      %s46 = int_to_ptr.vmem [resolvable:$true] %s45
      %51 = dma.hbm_to_vmem [thread:$0]  %s2, 1536, %s46, [#allocation7], 64, 64, 4
    $region13: #{tpu_custom_call.1} parent=1 // pred_fallthru
      _
    // Predicated region
    $region14: #{tpu_custom_call.1} parent=1 // pred_check
      _
    $region15: #{tpu_custom_call.1} parent=1 // pred_check_branch
      %53 = sbr.rel (0) target = $region17
    $region16: #{tpu_custom_call.1} parent=1 // pred_region
      _
    $region17: #{tpu_custom_call.1} parent=1 // pred_fallthru
      _
    // Predicated region
    $region18: #{tpu_custom_call.1} parent=1 // pred_check
      _
    $region19: #{tpu_custom_call.1} parent=1 // pred_check_branch
      %55 = sbr.rel (0) target = $region21
    $region20: #{tpu_custom_call.1} parent=1 // pred_region
      %s57 = ssub.s32 1024, 1024
      %58 = vsyncadd [#allocation10], %s57
      %s59 = sshll.u32 [#allocation9], 4
      %s60 = int_to_ptr.vmem [resolvable:$true] %s59
      %65 = dma.hbm_to_vmem [thread:$0]  %s4, 1024, %s60, [#allocation10], 64, 64, 4
    $region21: #{tpu_custom_call.1} parent=1 // pred_fallthru
      _
    // Predicated region
    $region22: #{tpu_custom_call.1} parent=1 // pred_check
      _
    $region23: #{tpu_custom_call.1} parent=1 // pred_check_branch
      %67 = sbr.rel (0) target = $region25
    $region24: #{tpu_custom_call.1} parent=1 // pred_region
      %s69 = ssub.s32 16, 16
      %70 = vsyncadd [#allocation5], %s69
      %s72 = sshll.u32 %s5, 4
      %s73 = int_to_ptr.vmem [resolvable:$true] %s72
      %75 = dma.vmem_to_smem %s73, 16, [#allocation11], [#allocation5]
    $region25: #{tpu_custom_call.1} parent=1 // pred_fallthru
      _
    // Predicated region
    $region26: #{tpu_custom_call.1} parent=1 // pred_check
      _
    $region27: #{tpu_custom_call.1} parent=1 // pred_check_branch
      %77 = sbr.rel (0) target = $region29
    $region28: #{tpu_custom_call.1} parent=1 // pred_region
      %78 = dma.done [#allocation3], 512
    $region29: #{tpu_custom_call.1} parent=1 // pred_fallthru
      _
    // Predicated region
    $region30: #{tpu_custom_call.1} parent=1 // pred_check
      _
    $region31: #{tpu_custom_call.1} parent=1 // pred_check_branch
      %80 = sbr.rel (0) target = $region33
    $region32: #{tpu_custom_call.1} parent=1 // pred_region
      %81 = dma.done [#allocation7], 128
    $region33: #{tpu_custom_call.1} parent=1 // pred_fallthru
      _
    // Predicated region
    $region34: #{tpu_custom_call.1} parent=1 // pred_check
      _
    $region35: #{tpu_custom_call.1} parent=1 // pred_check_branch
      %83 = sbr.rel (0) target = $region37
    $region36: #{tpu_custom_call.1} parent=1 // pred_region
      %84 = dma.done [#allocation7], 1536
    $region37: #{tpu_custom_call.1} parent=1 // pred_fallthru
      _
    // Predicated region
    $region38: #{tpu_custom_call.1} parent=1 // pred_check
      _
    $region39: #{tpu_custom_call.1} parent=1 // pred_check_branch
      %86 = sbr.rel (0) target = $region41
    $region40: #{tpu_custom_call.1} parent=1 // pred_region
      %87 = dma.done [#allocation10], 1024
    $region41: #{tpu_custom_call.1} parent=1 // pred_fallthru
      _
    // Predicated region
    $region42: #{tpu_custom_call.1} parent=1 // pred_check
      _
    $region43: #{tpu_custom_call.1} parent=1 // pred_check_branch
      %89 = sbr.rel (0) target = $region45
    $region44: #{tpu_custom_call.1} parent=1 // pred_region
      %90 = dma.done [#allocation5], 16
    $region45: #{tpu_custom_call.1} parent=1 // pred_fallthru
      _
    %91 = sfence
    %v93 = vld [vmem:[#allocation2] sm:$0xff]
    %v94 = vld [vmem:[#allocation2 + $0x8] sm:$0xff]
    %v95 = vld [vmem:[#allocation2 + $0x10] sm:$0xff]
    %v96 = vld [vmem:[#allocation2 + $0x18] sm:$0xff]
    %v97 = vld [vmem:[#allocation8] sm:$0xf]
    %v98 = vld [vmem:[#allocation8 + $0x4] sm:$0xf]
    %v99 = vld [vmem:[#allocation8 + $0x8] sm:$0xf]
    %v100 = vld [vmem:[#allocation8 + $0xc] sm:$0xf]
    %v101 = vld [vmem:[#allocation8 + $0x10] sm:$0xf]
    %v102 = vld [vmem:[#allocation8 + $0x14] sm:$0xf]
    %v103 = vld [vmem:[#allocation8 + $0x18] sm:$0xf]
    %v104 = vld [vmem:[#allocation8 + $0x1c] sm:$0xf]
    %v105 = vld [vmem:[#allocation8 + $0x20] sm:$0xf]
    %v106 = vld [vmem:[#allocation8 + $0x24] sm:$0xf]
    %v107 = vld [vmem:[#allocation8 + $0x28] sm:$0xf]
    %v108 = vld [vmem:[#allocation8 + $0x2c] sm:$0xf]
    %v109 = vld [vmem:[#allocation8 + $0x30] sm:$0xf]
    %v110 = vld [vmem:[#allocation8 + $0x34] sm:$0xf]
    %v111 = vld [vmem:[#allocation8 + $0x38] sm:$0xf]
    %v112 = vld [vmem:[#allocation8 + $0x3c] sm:$0xf]
    %v113 = vld [vmem:[#allocation8 + $0x40] sm:$0xf]
    %v114 = vld [vmem:[#allocation8 + $0x44] sm:$0xf]
    %v115 = vld [vmem:[#allocation8 + $0x48] sm:$0xf]
    %v116 = vld [vmem:[#allocation8 + $0x4c] sm:$0xf]
    %v117 = vld [vmem:[#allocation8 + $0x50] sm:$0xf]
    %v118 = vld [vmem:[#allocation8 + $0x54] sm:$0xf]
    %v119 = vld [vmem:[#allocation8 + $0x58] sm:$0xf]
    %v120 = vld [vmem:[#allocation8 + $0x5c] sm:$0xf]
    %v121 = vld [vmem:[%s3] sm:$0x1]
    %v123 = vlaneseq
    %v124 = vshrl.u32 %v123, 7
    %v125 = vsub.s32 0, %v124
    %v126 = vrot.slane %v121, %v125
    %v132 = vunpack.c.l.b16 %v93
    %v133 = vunpack.c.h.b16 %v93
    %v134 = vunpack.c.l.b16 %v94
    %v135 = vunpack.c.h.b16 %v94
    %v136 = vunpack.c.l.b16 %v95
    %v137 = vunpack.c.h.b16 %v95
    %v138 = vunpack.c.l.b16 %v96
    %v139 = vunpack.c.h.b16 %v96
    %v140 = vpack.c.b16 %v134, %v132
    %v141 = vpack.c.b16 %v135, %v133
    %v142 = vpack.c.b16 %v138, %v136
    %v143 = vpack.c.b16 %v139, %v137
    %v170 = vunpack.c.l.b16 %v97
    %v171 = vunpack.c.l.b16 %v98
    %v172 = vunpack.c.l.b16 %v99
    %v173 = vunpack.c.l.b16 %v100
    %v174 = vunpack.c.l.b16 %v101
    %v175 = vunpack.c.l.b16 %v102
    %v176 = vunpack.c.l.b16 %v103
    %v177 = vunpack.c.l.b16 %v104
    %v178 = vunpack.c.l.b16 %v105
    %v179 = vunpack.c.l.b16 %v106
    %v180 = vunpack.c.l.b16 %v107
    %v181 = vunpack.c.l.b16 %v108
    %v182 = vunpack.c.l.b16 %v109
    %v183 = vunpack.c.l.b16 %v110
    %v184 = vunpack.c.l.b16 %v111
    %v185 = vunpack.c.l.b16 %v112
    %v186 = vunpack.c.l.b16 %v113
    %v187 = vunpack.c.l.b16 %v114
    %v188 = vunpack.c.l.b16 %v115
    %v189 = vunpack.c.l.b16 %v116
    %v190 = vunpack.c.l.b16 %v117
    %v191 = vunpack.c.l.b16 %v118
    %v192 = vunpack.c.l.b16 %v119
    %v193 = vunpack.c.l.b16 %v120
    %v194 = vpack.c.b16 %v171, %v170
    %v195 = vpack.c.b16 %v173, %v172
    %v196 = vpack.c.b16 %v175, %v174
    %v197 = vpack.c.b16 %v177, %v176
    %v198 = vpack.c.b16 %v179, %v178
    %v199 = vpack.c.b16 %v181, %v180
    %v200 = vpack.c.b16 %v183, %v182
    %v201 = vpack.c.b16 %v185, %v184
    %v202 = vpack.c.b16 %v187, %v186
    %v203 = vpack.c.b16 %v189, %v188
    %v204 = vpack.c.b16 %v191, %v190
    %v205 = vpack.c.b16 %v193, %v192
    %vm218 = vcmask 523264
    %v220 = vsel %vm218, %v141, 0
    %v223 = vsel %vm218, %v143, 0
    %225 = vmatprep.subr.bf16.mxu0 0
    %226 = vmatpush1.bf16.msra.mxu0 %v194
    %227 = vmatprep.subr.bf16.mxu0 0
    %228 = vmatpush1.bf16.msra.mxu0 %v195
    %229 = vmatprep.subr.bf16.mxu0 0
    %230 = vmatpush1.bf16.msra.mxu0 %v196
    %231 = vmatprep.subr.bf16.mxu0 0
    %232 = vmatpush1.bf16.msra.mxu0 %v197
    %233 = vmatprep.subr.bf16.mxu0 0
    %234 = vmatpush1.bf16.msra.mxu0 %v198
    %235 = vmatprep.subr.bf16.mxu0 0
    %236 = vmatpush1.bf16.msra.mxu0 %v199
    %237 = vmatprep.subr.bf16.mxu0 0
    %238 = vmatpush1.bf16.msra.mxu0 %v200
    %239 = vmatprep.subr.bf16.mxu0 0
    %240 = vmatpush1.bf16.msra.mxu0 %v201
    %241 = vmatprep.subr.bf16.mxu0 0
    %242 = vmatpush1.bf16.msra.mxu0 %v202
    %243 = vmatprep.subr.bf16.mxu0 0
    %244 = vmatpush1.bf16.msra.mxu0 %v203
    %245 = vmatprep.subr.bf16.mxu0 0
    %246 = vmatpush1.bf16.msra.mxu0 %v204
    %247 = vmatprep.subr.bf16.mxu0 0
    %248 = vmatpush1.bf16.msra.mxu0 %v205
    %249 = vmatprep.subr.bf16.mxu0 0
    %250 = vmatpush1.bf16.msra.mxu0 0
    %251 = vmatprep.subr.bf16.mxu0 0
    %252 = vmatpush1.bf16.msra.mxu0 0
    %253 = vmatprep.subr.bf16.mxu0 0
    %254 = vmatpush1.bf16.msra.mxu0 0
    %255 = vmatprep.subr.bf16.mxu0 0
    %256 = vmatpush1.bf16.msra.mxu0 0
    %257 = vmatprep.mubr.bf16.mxu0 %v220
    %258 = vmatmul.mubr.bf16.gmra.mrb[0].mxu0 %v140
    %v259 = vpop.f32.mrb[0].mxu0
    %v260 = vadd.f32 %v126, %v259
    %v261 = vpop.f32.mrb[0].mxu0
    %v262 = vpop.f32.mrb[0].mxu0
    %v263 = vadd.f32 %v126, %v262
    %v264 = vpop.f32.mrb[0].mxu0
    %265 = vmatprep.mubr.bf16.mxu0 %v223
    %266 = vmatmul.mubr.bf16.gmra.mrb[0].mxu0 %v142
    %v267 = vpop.f32.mrb[0].mxu0
    %v268 = vadd.f32 %v126, %v267
    %v269 = vpop.f32.mrb[0].mxu0
    %v270 = vpop.f32.mrb[0].mxu0
    %v271 = vadd.f32 %v126, %v270
    %v272 = vpop.f32.mrb[0].mxu0
    %273 = vdwg.mxu0
    %v274 = vtanh.pop %v260
    %v275 = vtanh.pop %v263
    %v276 = vtanh.pop %v268
    %v277 = vtanh.pop %v271
    %v278 = vld [vmem:[#allocation6] sm:$0xff]
    %vm279 = vcmask 261120
    %v281 = vsel %vm279, %v278, 0
    %283 = vmatprep.subr.mxu0 0.0
    %284 = vmatpush1.msra.mxu0 %v274
    %285 = vmatprep.subr.mxu0 0.0
    %286 = vmatpush1.msra.mxu0 %v275
    %287 = vmatprep.subr.mxu0 0.0
    %288 = vmatpush1.msra.mxu0 %v276
    %289 = vmatprep.subr.mxu0 0.0
    %290 = vmatpush1.msra.mxu0 %v277
    %291 = vmatprep.subr.mxu0 0.0
    %292 = vmatpush1.msra.mxu0 0.0
    %293 = vmatprep.subr.mxu0 0.0
    %294 = vmatpush1.msra.mxu0 0.0
    %295 = vmatprep.subr.mxu0 0.0
    %296 = vmatpush1.msra.mxu0 0.0
    %297 = vmatprep.subr.mxu0 0.0
    %298 = vmatpush1.msra.mxu0 0.0
    %299 = vmatprep.subr.mxu0 0.0
    %300 = vmatpush1.msra.mxu0 0.0
    %301 = vmatprep.subr.mxu0 0.0
    %302 = vmatpush1.msra.mxu0 0.0
    %303 = vmatprep.subr.mxu0 0.0
    %304 = vmatpush1.msra.mxu0 0.0
    %305 = vmatprep.subr.mxu0 0.0
    %306 = vmatpush1.msra.mxu0 0.0
    %307 = vmatprep.subr.mxu0 0.0
    %308 = vmatpush1.msra.mxu0 0.0
    %309 = vmatprep.subr.mxu0 0.0
    %310 = vmatpush1.msra.mxu0 0.0
    %311 = vmatprep.subr.mxu0 0.0
    %312 = vmatpush1.msra.mxu0 0.0
    %313 = vmatprep.subr.mxu0 0.0
    %314 = vmatpush1.msra.mxu0 0.0
    %315 = vmatprep.subr.mxu0 0.0
    %316 = vmatpush1.msra.mxu0 0.0
    %317 = vmatprep.subr.mxu0 0.0
    %318 = vmatpush1.msra.mxu0 0.0
    %319 = vmatprep.subr.mxu0 0.0
    %320 = vmatpush1.msra.mxu0 0.0
    %321 = vmatprep.subr.mxu0 0.0
    %322 = vmatpush1.msra.mxu0 0.0
    %323 = vmatprep.subr.mxu0 0.0
    %324 = vmatpush1.msra.mxu0 0.0
    %325 = vmatprep.subr.mxu0 0.0
    %326 = vmatpush1.msra.mxu0 0.0
    %327 = vmatprep.subr.mxu0 0.0
    %328 = vmatpush1.msra.mxu0 0.0
    %329 = vmatprep.subr.mxu0 0.0
    %330 = vmatpush1.msra.mxu0 0.0
    %331 = vmatprep.subr.mxu0 0.0
    %332 = vmatpush1.msra.mxu0 0.0
    %333 = vmatprep.subr.mxu0 0.0
    %334 = vmatpush1.msra.mxu0 0.0
    %335 = vmatprep.subr.mxu0 0.0
    %336 = vmatpush1.msra.mxu0 0.0
    %337 = vmatprep.subr.mxu0 0.0
    %338 = vmatpush1.msra.mxu0 0.0
    %339 = vmatprep.subr.mxu0 0.0
    %340 = vmatpush1.msra.mxu0 0.0
    %341 = vmatprep.subr.mxu0 0.0
    %342 = vmatpush1.msra.mxu0 0.0
    %343 = vmatprep.subr.mxu0 0.0
    %344 = vmatpush1.msra.mxu0 0.0
    %345 = vmatprep.subr.mxu0 0.0
    %346 = vmatpush1.msra.mxu0 0.0
    %347 = vmatprep.mubr.f32.mxu0 0.0
    %348 = vmatmul.mubr.f32.gmra.mrb[0].mxu0 %v281
    %v349 = vpop.f32.mrb[0].mxu0
    %v350 = vadd.f32 0.0, %v349
    %v351 = vpop.f32.mrb[0].mxu0
    %352 = vdwg.mxu0
    %v353 = vpack.c.bf16 %v350, %v350
    %v354 = vld [vmem:[#allocation9] sm:$0xf]
    %v355 = vld [vmem:[#allocation9 + $0x4] sm:$0xf]
    %v356 = vld [vmem:[#allocation9 + $0x8] sm:$0xf]
    %v357 = vld [vmem:[#allocation9 + $0xc] sm:$0xf]
    %v358 = vld [vmem:[#allocation9 + $0x10] sm:$0xf]
    %v359 = vld [vmem:[#allocation9 + $0x14] sm:$0xf]
    %v360 = vld [vmem:[#allocation9 + $0x18] sm:$0xf]
    %v361 = vld [vmem:[#allocation9 + $0x1c] sm:$0xf]
    %v362 = vld [vmem:[#allocation9 + $0x20] sm:$0xf]
    %v363 = vld [vmem:[#allocation9 + $0x24] sm:$0xf]
    %v364 = vld [vmem:[#allocation9 + $0x28] sm:$0xf]
    %v365 = vld [vmem:[#allocation9 + $0x2c] sm:$0xf]
    %v366 = vld [vmem:[#allocation9 + $0x30] sm:$0xf]
    %v367 = vld [vmem:[#allocation9 + $0x34] sm:$0xf]
    %v368 = vld [vmem:[#allocation9 + $0x38] sm:$0xf]
    %v369 = vld [vmem:[#allocation9 + $0x3c] sm:$0xf]
    %v386 = vunpack.c.l.b16 %v354
    %v387 = vunpack.c.l.b16 %v355
    %v388 = vunpack.c.l.b16 %v356
    %v389 = vunpack.c.l.b16 %v357
    %v390 = vunpack.c.l.b16 %v358
    %v391 = vunpack.c.l.b16 %v359
    %v392 = vunpack.c.l.b16 %v360
    %v393 = vunpack.c.l.b16 %v361
    %v394 = vunpack.c.l.b16 %v362
    %v395 = vunpack.c.l.b16 %v363
    %v396 = vunpack.c.l.b16 %v364
    %v397 = vunpack.c.l.b16 %v365
    %v398 = vunpack.c.l.b16 %v366
    %v399 = vunpack.c.l.b16 %v367
    %v400 = vunpack.c.l.b16 %v368
    %v401 = vunpack.c.l.b16 %v369
    %v402 = vpack.c.b16 %v387, %v386
    %v403 = vpack.c.b16 %v389, %v388
    %v404 = vpack.c.b16 %v391, %v390
    %v405 = vpack.c.b16 %v393, %v392
    %v406 = vpack.c.b16 %v395, %v394
    %v407 = vpack.c.b16 %v397, %v396
    %v408 = vpack.c.b16 %v399, %v398
    %v409 = vpack.c.b16 %v401, %v400
    %418 = vmatprep.subr.bf16.mxu0 0
    %419 = vmatpush1.bf16.msra.mxu0 %v402
    %420 = vmatprep.subr.bf16.mxu0 0
    %421 = vmatpush1.bf16.msra.mxu0 %v403
    %422 = vmatprep.subr.bf16.mxu0 0
    %423 = vmatpush1.bf16.msra.mxu0 %v404
    %424 = vmatprep.subr.bf16.mxu0 0
    %425 = vmatpush1.bf16.msra.mxu0 %v405
    %426 = vmatprep.subr.bf16.mxu0 0
    %427 = vmatpush1.bf16.msra.mxu0 %v406
    %428 = vmatprep.subr.bf16.mxu0 0
    %429 = vmatpush1.bf16.msra.mxu0 %v407
    %430 = vmatprep.subr.bf16.mxu0 0
    %431 = vmatpush1.bf16.msra.mxu0 %v408
    %432 = vmatprep.subr.bf16.mxu0 0
    %433 = vmatpush1.bf16.msra.mxu0 %v409
    %434 = vmatprep.subr.bf16.mxu0 0
    %435 = vmatpush1.bf16.msra.mxu0 0
    %436 = vmatprep.subr.bf16.mxu0 0
    %437 = vmatpush1.bf16.msra.mxu0 0
    %438 = vmatprep.subr.bf16.mxu0 0
    %439 = vmatpush1.bf16.msra.mxu0 0
    %440 = vmatprep.subr.bf16.mxu0 0
    %441 = vmatpush1.bf16.msra.mxu0 0
    %442 = vmatprep.subr.bf16.mxu0 0
    %443 = vmatpush1.bf16.msra.mxu0 0
    %444 = vmatprep.subr.bf16.mxu0 0
    %445 = vmatpush1.bf16.msra.mxu0 0
    %446 = vmatprep.subr.bf16.mxu0 0
    %447 = vmatpush1.bf16.msra.mxu0 0
    %448 = vmatprep.subr.bf16.mxu0 0
    %449 = vmatpush1.bf16.msra.mxu0 0
    %450 = vmatprep.mubr.bf16.mxu0 0
    %451 = vmatmul.mubr.bf16.gmra.mrb[0].mxu0 %v353
    %v452 = vpop.f32.mrb[0].mxu0
    %v453 = vadd.f32 0.0, %v452
    %v454 = vpop.f32.mrb[0].mxu0
    %v455 = vpop.f32.mrb[0].mxu0
    %v456 = vpop.f32.mrb[0].mxu0
    %457 = vdwg.mxu0
    %s458 = sld [smem:[#allocation11 + $0x1]]
    %s459 = sld [smem:[#allocation11]]
    %v460 = vstv %s459
    %v461 = vmul.f32 %v453, %v460
    %v462 = vstv %s458
    %v463 = vrsqrt.pop %v462
    %v464 = vmul.f32 %v462, %v463
    %vm465 = vcmp.eq.f32.partialorder %v462, inf
    %v466 = vsel %vm465, %v462, %v464
    %vm467 = vcmp.eq.f32.partialorder %v462, 0.0
    %v468 = vand.u32 %v462, 2147483648
    %v469 = vsel %vm467, %v468, %v466
    %s470 = vtos %v469
    %v471 = vmul.f32 %v461, %v461
    %472 = vadd.xlane.f32.xlu0 %v471
    %v473 = vpop.xlane.xlu0 %472
    %v474 = vrsqrt.pop %v473
    %v475 = vmul.f32 %v473, %v474
    %vm476 = vcmp.eq.f32.partialorder %v473, inf
    %v477 = vsel %vm476, %v473, %v475
    %vm478 = vcmp.eq.f32.partialorder %v473, 0.0
    %v479 = vand.u32 %v473, 2147483648
    %v480 = vsel %vm478, %v479, %v477
    %v481 = vstv %s470
    %v482 = vmul.f32 %v481, %v480
    %v483 = vmax.f32 %v482, 1e-08
    %v484 = vmul.f32 %v483, 1.442695
    %v485 = vpow.pop %v484
    %v486 = vrcp.pop %v485
    %v487 = vmul.f32 1.0, %v486
    %v488 = vsub.f32 %v485, %v487
    %v489 = vmul.f32 %v488, 0.5
    %v490 = vmul.f32 %v489, %v461
    %v491 = vrcp.pop %v483
    %v492 = vmul.f32 %v490, %v491
    %493 = vst [vmem:[#allocation12] sm:$0xff] %v492
    %v494 = vmul.f32 %v492, %v492
    %495 = vadd.xlane.f32.xlu0 %v494
    %v496 = vpop.xlane.xlu0 %495
    %v497 = vstv %s458
    %v498 = vrcp.pop %v497
    %s499 = vtos %v498
    %v500 = vstv %s499
    %v501 = vadd.f32 %v500, %v496
    %v502 = vrsqrt.pop %v501
    %v503 = vmul.f32 %v501, %v502
    %vm504 = vcmp.eq.f32.partialorder %v501, inf
    %v505 = vsel %vm504, %v501, %v503
    %vm506 = vcmp.eq.f32.partialorder %v501, 0.0
    %v507 = vand.u32 %v501, 2147483648
    %v508 = vsel %vm506, %v507, %v505
    %vm509 = vcmask 7168
    %510 = vst.msk [vmem:[%s7] sm:$0xff] %vm509, %v508
    %v511 = vrsqrt.pop %v496
    %v512 = vmul.f32 %v496, %v511
    %vm513 = vcmp.eq.f32.partialorder %v496, inf
    %v514 = vsel %vm513, %v496, %v512
    %vm515 = vcmp.eq.f32.partialorder %v496, 0.0
    %v516 = vand.u32 %v496, 2147483648
    %v517 = vsel %vm515, %v516, %v514
    %vm518 = vcmask 15368
    %519 = vst.msk [vmem:[%s7] sm:$0xff] %vm518, %v517
    // Predicated region
    $region46: #{tpu_custom_call.1} parent=1 // pred_check
      _
    $region47: #{tpu_custom_call.1} parent=1 // pred_check_branch
      %521 = sbr.rel (0) target = $region49
    $region48: #{tpu_custom_call.1} parent=1 // pred_region
      %s523 = ssub.s32 128, 128
      %524 = vsyncadd [#allocation4], %s523
      %s526 = sshll.u32 [#allocation12], 4
      %s527 = int_to_ptr.vmem [resolvable:$true] %s526
      %529 = dma.vmem_to_hbm [thread:$0]  %s527, 128, %s6, [#allocation4]
    $region49: #{tpu_custom_call.1} parent=1 // pred_fallthru
      _
    // Predicated region
    $region50: #{tpu_custom_call.1} parent=1 // pred_check
      _
    $region51: #{tpu_custom_call.1} parent=1 // pred_check_branch
      %531 = sbr.rel (0) target = $region53
    $region52: #{tpu_custom_call.1} parent=1 // pred_region
      _
    $region53: #{tpu_custom_call.1} parent=1 // pred_fallthru
      _
    // Predicated region
    $region54: #{tpu_custom_call.1} parent=1 // pred_check
      _
    $region55: #{tpu_custom_call.1} parent=1 // pred_check_branch
      %533 = sbr.rel (0) target = $region57
    $region56: #{tpu_custom_call.1} parent=1 // pred_region
      %534 = dma.done [#allocation4], 128
    $region57: #{tpu_custom_call.1} parent=1 // pred_fallthru
      _
    // Predicated region
    $region58: #{tpu_custom_call.1} parent=1 // pred_check
      _
    $region59: #{tpu_custom_call.1} parent=1 // pred_check_branch
      %536 = sbr.rel (0) target = $region61
    $region60: #{tpu_custom_call.1} parent=1 // pred_region
      _
    $region61: #{tpu_custom_call.1} parent=1 // pred_fallthru
      _
    %537 = vsyncpa [#allocation3], 1
    %538 = vsyncpa [#allocation7], 1
    %539 = vsyncpa [#allocation10], 1
    %540 = vsyncpa [#allocation4], 1
    %541 = vsyncpa [#allocation5], 1

</llo_original>
